<compile_context>
chip_gen: v6e
topology: v6e:2x2x1
jax: 0.10.0
libtpu: 0.0.40
codegen_flags: <defaults>
</compile_context>

<pallas_src>
from typing import NamedTuple

import jax
import jax.numpy as jnp
import numpy as np
from jax.experimental import pallas as pl
from jax.experimental.pallas import tpu as pltpu


def _round_up(x, m):
    return ((x + m - 1) // m) * m


# ------------------------- candidate preparation --------------------------- #

class PreparedCandidates(NamedTuple):
    """Candidate embeddings padded, cast and transposed once (cacheable)."""
    cT: jax.Array        # [D, Cp], compute dtype, candidate axis on TPU lanes
    num_candidates: int  # C (un-padded)
    tc: int              # candidate tile width (lanes)


def prepare_candidates(candidate, *, tc=2048, compute_dtype=jnp.bfloat16):
    """Pad C to a tile multiple, cast to the MXU dtype, transpose to [D, Cp].

    Doing this once per candidate set (instead of per decoder call) removes a
    full read+write pass over the candidate matrix from every call.
    """
    C, D = candidate.shape
    tc = min(tc, _round_up(C, 128))
    Cp = _round_up(C, tc)
    # Megacore: prefer >= 2 candidate blocks so the outer "parallel" grid axis
    # can shard across both TensorCores (each keeps its own cT tile resident).
    if Cp // tc < 2 and Cp >= 256:
        tc = max(128, _round_up(Cp // 2, 128))
        Cp = _round_up(C, tc)
    c = candidate
    if Cp != C:
        c = jnp.pad(c, ((0, Cp - C), (0, 0)))
    return PreparedCandidates(c.astype(compute_dtype).T, C, tc)


# ----------------------------- inner_product ------------------------------ #

def _inner_product_kernel(q_ref, cT_ref, o_ref):
    # q_ref: [TQ, D] (bf16), cT_ref: [D, TC] (bf16)  ->  o_ref: [TQ, TC]
    o_ref[...] = jnp.dot(q_ref[...], cT_ref[...],
                         preferred_element_type=jnp.float32).astype(o_ref.dtype)


def inner_product_decoder(query, candidate, *, tq=512, tc=2048,
                          compute_dtype=jnp.bfloat16, out_dtype=jnp.bfloat16):
    if not isinstance(candidate, PreparedCandidates):
        candidate = prepare_candidates(candidate, tc=tc, compute_dtype=compute_dtype)
    cT, C, tc = candidate
    compute_dtype = cT.dtype
    D, Cp = cT.shape
    Q, Dq = query.shape
    assert Dq == D
    tq = min(tq, _round_up(Q, 16))
    Qp = _round_up(Q, tq)
    q = query if Qp == Q else jnp.pad(query, ((0, Qp - Q), (0, 0)))
    q = q.astype(compute_dtype)

    out_itemsize = np.dtype(out_dtype).itemsize
    in_itemsize = np.dtype(compute_dtype).itemsize
    # Double-buffered input/output tiles + headroom; capped for v7x's 64 MiB VMEM,
    # floored above v5e's 16 MiB default scoped limit.
    est = 2 * (tq * D + D * tc) * in_itemsize + 2 * tq * tc * out_itemsize
    vmem_limit = int(min(max(4 * est, 32 << 20), 64 << 20))

    # Grid: candidate blocks OUTER, query blocks INNER -> the large cT tile is
    # fetched once per outer step and stays VMEM-resident; only the small query
    # tile (and the output tile) move every inner step.
    grid = (Cp // tc, Qp // tq)
    out = pl.pallas_call(
        _inner_product_kernel,
        out_shape=jax.ShapeDtypeStruct((Qp, Cp), out_dtype),
        grid_spec=pltpu.PrefetchScalarGridSpec(
            num_scalar_prefetch=0,
            grid=grid,
            in_specs=[
                # TODO(synk): add pipeline_mode=pl.Buffered(3) on the query spec if
                # profiles show exposed DMA on this per-step re-fetched operand.
                pl.BlockSpec((tq, D), lambda j, i: (i, 0)),   # small, per-step
                pl.BlockSpec((D, tc), lambda j, i: (0, j)),   # large, resident
            ],
            out_specs=pl.BlockSpec((tq, tc), lambda j, i: (i, j)),
        ),
        compiler_params=pltpu.CompilerParams(
            dimension_semantics=("parallel", "parallel"),
            vmem_limit_bytes=vmem_limit),
        cost_estimate=pl.CostEstimate(
            flops=2 * Q * C * D,
            transcendentals=0,
            bytes_accessed=(Q * D + C * D) * in_itemsize + Q * C * out_itemsize),
    )(q, cT)
    if (Qp, Cp) != (Q, C):      # only pay the slice copy when padding happened
        out = out[:Q, :C]
    return out


# ------------------------------ hadamard_MLP ------------------------------ #

def _hadamard_mlp_kernel(q_ref, cT_ref, w1_ref, *rest):
    """relu-MLP over per-(query, candidate) hadamard products, reduced to a score.

    q_ref : [TQ, D] bf16    cT_ref : [D, TC] bf16 (candidates on lanes)
    w1_ref: [H1, D] bf16 (VMEM)
    rest  : f32 [Ho, Hi] weights in SMEM for layers 2..L, then the output ref.
    """
    w_refs = rest[:-1]
    o_ref = rest[-1]
    q = q_ref[...]
    cT = cT_ref[...]
    w1 = w1_ref[...]
    tq = q.shape[0]
    h1, d = w1.shape
    # relu(W1 @ (q_r ⊙ c)) == relu((W1 row-scaled by q_r) @ c^T): batch every query
    # row of the tile into ONE MXU matmul with M = h1*tq rows. `scaled` is built
    # h-major so the reshape only merges leading dims (relayout-free for tq%16==0,
    # any h1) and every hidden plane of the result is a tile-aligned sublane slice.
    scaled = (w1[:, None, :] * q[None, :, :]).reshape(h1 * tq, d)
    a = jnp.dot(scaled, cT, preferred_element_type=jnp.float32)     # [H1*TQ, TC] f32
    a = jnp.maximum(a, 0.0)             # act after every linear (plain_last=False)
    if not w_refs:
        # channel_list == [D, 1]: `a` is already the [TQ, TC] scores.
        o_ref[...] = a.astype(o_ref.dtype)
        return
    planes = [a[h * tq:(h + 1) * tq, :] for h in range(h1)]         # H1 x [TQ, TC]
    # Later layers have tiny widths: tq-batched 16x16 MXU matmuls are <1% utilized,
    # so do unrolled VPU weighted sums (f32 accumulation, scalar weights from SMEM).
    # TODO(synk): add an MXU contraction fallback if a middle layer is ever wide (>~64).
    for w_ref in w_refs:
        ho, hi = w_ref.shape
        new_planes = []
        for o in range(ho):
            acc = planes[0] * w_ref[o, 0]
            for i in range(1, hi):
                acc = acc + planes[i] * w_ref[o, i]
            new_planes.append(jnp.maximum(acc, 0.0))
        planes = new_planes
    # torch's .sum(dim=-1) just squeezes the size-1 output channel.
    o_ref[...] = planes[0].astype(o_ref.dtype)


def hadamard_mlp_decoder(query, candidate, weights, *, tq=None, tc=2048,
                         compute_dtype=jnp.bfloat16, out_dtype=jnp.bfloat16):
    num_layers = len(weights)
    assert num_layers >= 1, "hadamard_MLP needs at least one linear layer"
    if not isinstance(candidate, PreparedCandidates):
        candidate = prepare_candidates(candidate, tc=tc, compute_dtype=compute_dtype)
    cT, C, tc = candidate
    compute_dtype = cT.dtype
    D, Cp = cT.shape
    Q, Dq = query.shape
    assert Dq == D and weights[0].shape[1] == D
    assert weights[-1].shape[0] == 1, "last decoder channel must be 1"
    for wa, wb in zip(weights[:-1], weights[1:]):
        assert wb.shape[1] == wa.shape[0]
    h1 = int(weights[0].shape[0])
    widths = [h1] + [int(w.shape[0]) for w in weights[1:]]

    if tq is None:
        # Target ~1024 MXU rows in the first-layer batched matmul (M = h1*tq).
        tq = int(np.clip(_round_up(max(1, 1024 // max(h1, 1)), 16), 16, 512))
    tq = min(tq, _round_up(Q, 16))
    Qp = _round_up(Q, tq)
    q = query if Qp == Q else jnp.pad(query, ((0, Qp - Q), (0, 0)))
    q = q.astype(compute_dtype)
    # Only the MXU-facing first-layer weight is bf16; the tiny later weights stay
    # f32 and live in SMEM (scalar reads feeding the VPU layers).
    w1 = weights[0].astype(compute_dtype)
    w_small = [w.astype(jnp.float32) for w in weights[1:]]

    out_itemsize = np.dtype(out_dtype).itemsize
    in_itemsize = np.dtype(compute_dtype).itemsize
    est = (2 * (tq * D + D * tc) * in_itemsize          # double-buffered q / cT tiles
           + 2 * tq * tc * out_itemsize                 # double-buffered out tile
           + h1 * D * in_itemsize                       # resident W1
           + h1 * tq * tc * 4                           # first-layer f32 activations
           + max(widths) * tq * tc * 4)                 # live planes of widest layer
    vmem_limit = int(min(max(2 * est, 32 << 20), 64 << 20))

    flops = 2 * Q * C * sum(a * b for a, b in zip([D] + widths[:-1], widths))
    bytes_accessed = ((Q * D + C * D + h1 * D) * in_itemsize
                      + sum(int(np.prod(w.shape)) * 4 for w in w_small)
                      + Q * C * out_itemsize)

    grid = (Cp // tc, Qp // tq)   # candidate blocks outer -> cT stays VMEM-resident
    out = pl.pallas_call(
        _hadamard_mlp_kernel,
        out_shape=jax.ShapeDtypeStruct((Qp, Cp), out_dtype),
        grid_spec=pltpu.PrefetchScalarGridSpec(
            num_scalar_prefetch=0,
            grid=grid,
            in_specs=[
                pl.BlockSpec((tq, D), lambda j, i: (i, 0)),     # small, per-step
                pl.BlockSpec((D, tc), lambda j, i: (0, j)),     # large, resident
                pl.BlockSpec((h1, D), lambda j, i: (0, 0)),     # W1, resident
            ] + [pl.BlockSpec(memory_space=pltpu.MemorySpace.SMEM) for _ in w_small],
            out_specs=pl.BlockSpec((tq, tc), lambda j, i: (i, j)),
        ),
        compiler_params=pltpu.CompilerParams(
            dimension_semantics=("parallel", "parallel"),
            vmem_limit_bytes=vmem_limit),
        cost_estimate=pl.CostEstimate(flops=flops, transcendentals=0,
                                      bytes_accessed=bytes_accessed),
    )(q, cT, w1, *w_small)
    if (Qp, Cp) != (Q, C):
        out = out[:Q, :C]
    return out


# --------------------------- module-like wrapper --------------------------- #

class LinkPredictionDecoder:
    """JAX/Pallas port of gigl LinkPredictionDecoder.forward (module defaults)."""

    def __init__(self, decoder_type="inner_product", decoder_channel_list=None,
                 key=None, out_dtype=jnp.bfloat16):
        self.decoder_type = decoder_type
        self.decoder_channel_list = decoder_channel_list
        self.out_dtype = out_dtype
        self.weights = []
        self._cand_cache = None   # (candidate array object, PreparedCandidates)
        if decoder_type == "hadamard_MLP":
            if not isinstance(decoder_channel_list, list):
                raise ValueError("decoder_channel_list required for hadamard_MLP")
            if len(decoder_channel_list) <= 1 or decoder_channel_list[-1] != 1:
                raise ValueError("invalid decoder_channel_list")
            key = key if key is not None else jax.random.PRNGKey(0)
            # Deterministic synthetic weights, torch Linear convention [out, in], no bias.
            for li, (c_in, c_out) in enumerate(
                    zip(decoder_channel_list[:-1], decoder_channel_list[1:])):
                k = jax.random.fold_in(key, li)
                w = jax.random.normal(k, (c_out, c_in), jnp.float32) / np.sqrt(c_in)
                self.weights.append(w)

    def _prepare(self, candidate):
        # Amortize the pad + cast + transpose pre-pass across calls that reuse
        # the same candidate set (typical retrieval serving pattern).
        if self._cand_cache is not None and self._cand_cache[0] is candidate:
            return self._cand_cache[1]
        prepared = prepare_candidates(candidate)
        self._cand_cache = (candidate, prepared)
        return prepared

    def __call__(self, query_embeddings, candidate_embeddings):
        cand = self._prepare(candidate_embeddings)
        if self.decoder_type == "inner_product":
            return inner_product_decoder(query_embeddings, cand,
                                         out_dtype=self.out_dtype)
        elif self.decoder_type == "hadamard_MLP":
            return hadamard_mlp_decoder(query_embeddings, cand, self.weights,
                                        out_dtype=self.out_dtype)
        raise ValueError(self.decoder_type)


# ------------------------------- references -------------------------------- #

def _ref_inner_product(q, c):
    return q @ c.T


def _ref_hadamard_mlp(q, c, weights):
    x = q[:, None, :] * c[None, :, :]          # [Q, C, D]
    for w in weights:                          # w: [out, in]
        x = jnp.maximum(x @ w.T, 0.0)          # relu after every linear (plain_last=False)
    return jnp.sum(x, axis=-1)                 # [Q, C]


# ---------------------------------- main ----------------------------------- #

if __name__ == "__main__":
    key = jax.random.PRNGKey(0)
    kq, kc, kw1, kw2 = jax.random.split(key, 4)

    Q, C, D = 16, 256, 32
    query = jax.random.normal(kq, (Q, D), jnp.float32)
    candidate = jax.random.normal(kc, (C, D), jnp.float32)

    def _q(x):  # mimic the bf16 quantization the kernels apply at the HBM boundary
        return x.astype(jnp.bfloat16).astype(jnp.float32)

    # --- inner_product decoder ---
    dec_ip = LinkPredictionDecoder("inner_product")
    scores_ip = jax.block_until_ready(dec_ip(query, candidate))
    assert scores_ip.shape == (Q, C)
    ref_ip = _ref_inner_product(_q(query), _q(candidate))
    np.testing.assert_allclose(np.asarray(scores_ip.astype(jnp.float32)),
                               np.asarray(ref_ip), rtol=2e-2, atol=2e-2)

    # --- hadamard_MLP decoder, 2-layer MLP ([D, 16, 1]) ---
    dec_mlp = LinkPredictionDecoder("hadamard_MLP", [D, 16, 1], key=kw1)
    scores_mlp = jax.block_until_ready(dec_mlp(query, candidate))
    assert scores_mlp.shape == (Q, C)
    ref_w = [_q(dec_mlp.weights[0])] + list(dec_mlp.weights[1:])
    ref_mlp = _ref_hadamard_mlp(_q(query), _q(candidate), ref_w)
    np.testing.assert_allclose(np.asarray(scores_mlp.astype(jnp.float32)),
                               np.asarray(ref_mlp), rtol=3e-2, atol=3e-2)

    # --- hadamard_MLP decoder with a middle layer ([D, 16, 8, 1]) ---
    dec_mlp3 = LinkPredictionDecoder("hadamard_MLP", [D, 16, 8, 1], key=kw2)
    scores_mlp3 = jax.block_until_ready(dec_mlp3(query, candidate))
    assert scores_mlp3.shape == (Q, C)
    ref_w3 = [_q(dec_mlp3.weights[0])] + list(dec_mlp3.weights[1:])
    ref_mlp3 = _ref_hadamard_mlp(_q(query), _q(candidate), ref_w3)
    np.testing.assert_allclose(np.asarray(scores_mlp3.astype(jnp.float32)),
                               np.asarray(ref_mlp3), rtol=3e-2, atol=3e-2)

    # --- ragged shapes exercise the zero-pad + slice path ---
    Q2, C2 = 10, 200
    query2 = jax.random.normal(jax.random.fold_in(key, 7), (Q2, D), jnp.float32)
    cand2 = jax.random.normal(jax.random.fold_in(key, 8), (C2, D), jnp.float32)
    scores2 = jax.block_until_ready(inner_product_decoder(query2, cand2))
    assert scores2.shape == (Q2, C2)
    np.testing.assert_allclose(np.asarray(scores2.astype(jnp.float32)),
                               np.asarray(_ref_inner_product(_q(query2), _q(cand2))),
                               rtol=2e-2, atol=2e-2)

    # --- second call reuses the cached, pre-transposed candidate buffer ---
    _ = jax.block_until_ready(dec_ip(query, candidate))

    print("KERNEL_OK")
</pallas_src>

<mosaic_0001>
module attributes {stable_mosaic.version = 11 : i64} {
  func.func @_inner_product_kernel(%arg0: i32, %arg1: i32, %arg2: memref<16x32xbf16, #tpu.memory_space<vmem>>, %arg3: memref<32x128xbf16, #tpu.memory_space<vmem>>, %arg4: memref<16x128xbf16, #tpu.memory_space<vmem>>) attributes {dimension_semantics = [#tpu.dimension_semantics<parallel>, #tpu.dimension_semantics<parallel>], iteration_bounds = array<i64: 2, 1>, scalar_prefetch = 0 : i64, scratch_operands = 0 : i64, tpu.core_type = #tpu.core_type<tc>, window_params = [{transform_indices = @transform_0, window_bounds = array<i64: 16, 32>}, {transform_indices = @transform_1, window_bounds = array<i64: 32, 128>}, {transform_indices = @transform_2, window_bounds = array<i64: 16, 128>}]} {
    %c0 = arith.constant 0 : index
    %c0_0 = arith.constant 0 : index
    %0 = vector.load %arg2[%c0, %c0_0] : memref<16x32xbf16, #tpu.memory_space<vmem>>, vector<16x32xbf16>
    %c0_1 = arith.constant 0 : index
    %c0_2 = arith.constant 0 : index
    %1 = vector.load %arg3[%c0_1, %c0_2] : memref<32x128xbf16, #tpu.memory_space<vmem>>, vector<32x128xbf16>
    %cst = arith.constant dense<0.000000e+00> : vector<16x128xf32>
    %2 = tpu.matmul %0, %1, %cst {dimension_numbers = #tpu.dot_dimension_numbers<[1], [0], [0], [1], [0, 0, 1, 1], [], []>} : vector<16x32xbf16>, vector<32x128xbf16>, vector<16x128xf32> -> vector<16x128xf32>
    %3 = arith.truncf %2 : vector<16x128xf32> to vector<16x128xbf16>
    %c0_3 = arith.constant 0 : index
    %c0_4 = arith.constant 0 : index
    %4 = vector.load %arg4[%c0_3, %c0_4] : memref<16x128xbf16, #tpu.memory_space<vmem>>, vector<16x128xbf16>
    tpu.vector_store %arg4[%c0_3, %c0_4], %3 {strides = array<i32>} : memref<16x128xbf16, #tpu.memory_space<vmem>>, vector<16x128xbf16>,
    return
  }
  func.func @transform_0(%arg0: i32, %arg1: i32) -> (i32, i32) {
    %c0_i32 = arith.constant 0 : i32
    %c0_i32_0 = arith.constant 0 : i32
    return %arg1, %c0_i32 : i32, i32
  }
  func.func @transform_1(%arg0: i32, %arg1: i32) -> (i32, i32) {
    %c0_i32 = arith.constant 0 : i32
    %c0_i32_0 = arith.constant 0 : i32
    return %c0_i32, %arg0 : i32, i32
  }
  func.func @transform_2(%arg0: i32, %arg1: i32) -> (i32, i32) {
    %c0_i32 = arith.constant 0 : i32
    return %arg1, %arg0 : i32, i32
  }
}

</mosaic_0001>

<llo_original>
// kernel: tpu_custom_call.1
$region0: #{tpu_custom_call.1}
  #allocation0 [shape = 'u32[]', space=smem, size = 0x4, offset = 0x4, fixed_abs, tag = 'smem constant byte address 0x4 - core index']
  #allocation1 [shape = 'u32[144,128]{1,0:T(1,128)}', space=vmem, size = 0x12000, scoped, tag = 'internal scratch']
  %s0 = inlined_call_operand.hbm [shape: bf16[16,32], index: 0, kind: input, shape index: {}]
  %s1 = inlined_call_operand.hbm [shape: bf16[32,256], index: 1, kind: input, shape index: {}]
  %s2 = inlined_call_operand.hbm [shape: bf16[16,256], index: 2, kind: output, shape index: {}]
  %s3 = sld [smem:[#allocation0]]
  $region49: #{tpu_custom_call.1} parent=0
    _
  %s5 = ssub.s32 1, %s3
  %s6 = scalar_select 0, %s5, %s3
  $region1: #{tpu_custom_call.1} parent=0
    #allocation2 [shape = 'u8[4096]{0}', space=vmem, size = 0x1000, scoped, tag = 'input window, operand 0, single buffered']
    #allocation3 [shape = 's32[2]{0}', space=sflag, size = 0x8, scoped, tag = 'scoped memory for tpu_custom_call.1']
    #allocation4 [shape = 's32[2]{0}', space=sflag, size = 0x8, scoped, tag = 'scoped memory for tpu_custom_call.1']
    #allocation5 [shape = 'u8[16384]{0}', space=vmem, size = 0x4000, scoped, tag = 'input window, operand 1']
    #allocation6 [shape = 's32[2]{0}', space=sflag, size = 0x8, scoped, tag = 'scoped memory for tpu_custom_call.1']
    #allocation7 [shape = 'u8[8192]{0}', space=vmem, size = 0x2000, scoped, tag = 'output window, operand 0']
    %7 = vsyncpa [#allocation3], 0
    %8 = vsyncpa [#allocation6], 0
    %s9 = scalar_lea.sflag [#allocation6], 1
    %10 = vsyncpa %s9, 0
    %11 = vsyncpa [#allocation4], 0
    %s12 = scalar_lea.sflag [#allocation4], 1
    %13 = vsyncpa %s12, 0
    loop: start=0, step=1, limit=4
    $region2: #{tpu_custom_call.1} parent=1 // loop_pre_header
      _
    $region3: #{tpu_custom_call.1} parent=1 // loop_header
      %s15 = sphi 0, %s19
      %p16 = scmp.ge.s32.totalorder %s15, 4
      %s22 = sphi 0, %s34
      %s23 = sphi 0, %s30
      %s24 = sphi 0, %s22
      %s25 = sphi 0, %s23
      %s26 = sphi 0, %s24
      %s27 = sphi 0, %s25
      %s37 = sphi 0, %s39
      %s40 = sphi 0, %s37
      %s41 = sphi 0, %s40
      %s57 = sphi 0, %s41
      %s63 = sphi 0, %s65
      %s66 = sphi 0, %s63
      %s67 = sphi 0, %s66
      %s83 = sphi 0, %s67
      %s91 = sphi 0, %s93
      %s94 = sphi 0, %s91
      %s95 = sphi 0, %s94
      %s111 = sphi 0, %s95
    $region4: #{tpu_custom_call.1} parent=1 // loop_header_branch
      %18 = sbr.rel (%p16) target = $region8
    $region5: #{tpu_custom_call.1} parent=1 // loop_body
      %s20 = ssub.s32 %s15, 1
      %s21 = ssub.s32 %s15, 2
      %s28 = sadd.s32 1, %s23
      %p29 = scmp.ge.s32.totalorder %s28, 1
      %s30 = scalar_select %p29, 0, %s28
      %s31 = sadd.s32 1, %s22
      %s32 = scalar_select %p29, %s31, %s22
      %p33 = scmp.ge.s32.totalorder %s32, 2
      %s34 = scalar_select %p33, 0, %s32
      %s35 = ssub.s32 %s23, %s30
      %p36 = scmp.eq.s32.totalorder %s35, 0
      %s38 = sadd.s32 %s37, 1
      %s39 = scalar_select %p36, %s37, %s38
      %p42 = pneg %p36
      %p43 = scmp.eq.s32.totalorder %s15, 1
      %p44 = por %p42, %p43
      %p45 = scmp.ne.s32.totalorder %s37, %s40
      %p46 = scmp.eq.s32.totalorder %s15, 0
      %p47 = por %p45, %p46
      %p48 = scmp.ne.s32.totalorder %s37, %s40
      %p49 = scmp.eq.s32.totalorder %s20, 1
      %p50 = por %p48, %p49
      %p51 = scmp.ne.s32.totalorder %s40, %s41
      %p52 = scmp.eq.s32.totalorder %s20, 0
      %p53 = por %p51, %p52
      %p54 = scmp.ne.s32.totalorder %s40, %s41
      %p55 = scmp.eq.s32.totalorder %s21, 1
      %p56 = por %p54, %p55
      %p58 = scmp.ne.s32.totalorder %s41, %s57
      %p59 = scmp.eq.s32.totalorder %s21, 0
      %p60 = por %p58, %p59
      %s61 = ssub.s32 %s22, %s34
      %p62 = scmp.eq.s32.totalorder %s61, 0
      %s64 = sadd.s32 %s63, 1
      %s65 = scalar_select %p62, %s63, %s64
      %p68 = pneg %p62
      %p69 = scmp.eq.s32.totalorder %s15, 1
      %p70 = por %p68, %p69
      %p71 = scmp.ne.s32.totalorder %s63, %s66
      %p72 = scmp.eq.s32.totalorder %s15, 0
      %p73 = por %p71, %p72
      %p74 = scmp.ne.s32.totalorder %s63, %s66
      %p75 = scmp.eq.s32.totalorder %s20, 1
      %p76 = por %p74, %p75
      %p77 = scmp.ne.s32.totalorder %s66, %s67
      %p78 = scmp.eq.s32.totalorder %s20, 0
      %p79 = por %p77, %p78
      %p80 = scmp.ne.s32.totalorder %s66, %s67
      %p81 = scmp.eq.s32.totalorder %s21, 1
      %p82 = por %p80, %p81
      %p84 = scmp.ne.s32.totalorder %s67, %s83
      %p85 = scmp.eq.s32.totalorder %s21, 0
      %p86 = por %p84, %p85
      %s87 = ssub.s32 %s23, %s30
      %s88 = ssub.s32 %s22, %s34
      %s89 = sor.u32 %s87, %s88
      %p90 = scmp.eq.s32.totalorder %s89, 0
      %s92 = sadd.s32 %s91, 1
      %s93 = scalar_select %p90, %s91, %s92
      %p96 = pneg %p90
      %p97 = scmp.eq.s32.totalorder %s15, 1
      %p98 = por %p96, %p97
      %p99 = scmp.ne.s32.totalorder %s91, %s94
      %p100 = scmp.eq.s32.totalorder %s15, 0
      %p101 = por %p99, %p100
      %p102 = scmp.ne.s32.totalorder %s91, %s94
      %p103 = scmp.eq.s32.totalorder %s20, 1
      %p104 = por %p102, %p103
      %p105 = scmp.ne.s32.totalorder %s94, %s95
      %p106 = scmp.eq.s32.totalorder %s20, 0
      %p107 = por %p105, %p106
      %p108 = scmp.ne.s32.totalorder %s94, %s95
      %p109 = scmp.eq.s32.totalorder %s21, 1
      %p110 = por %p108, %p109
      %p112 = scmp.ne.s32.totalorder %s95, %s111
      %p113 = scmp.eq.s32.totalorder %s21, 0
      %p114 = por %p112, %p113
      %p115 = scmp.le.s32.totalorder 1, %s15
      %p116 = scmp.lt.s32.totalorder %s15, 3
      %p117 = pnand %p115, %p116
      %p118 = pneg %p117
      // Predicated region
      $region9: #{tpu_custom_call.1} parent=5 // pred_check
        _
      $region10: #{tpu_custom_call.1} parent=5 // pred_check_branch
        %120 = sbr.rel (%p117) target = $region12
      $region11: #{tpu_custom_call.1} parent=5 // pred_region
        %s121 = ssub.s32 %s15, 1
        // Predicated region
        $region13: #{tpu_custom_call.1} parent=11 // pred_check
          %p122 = pneg %p53
        $region14: #{tpu_custom_call.1} parent=11 // pred_check_branch
          %124 = sbr.rel (%p122) target = $region16
        $region15: #{tpu_custom_call.1} parent=11 // pred_region
          %s125 = smul.u32 2, %s25
          %s127 = ssub.s32 128, 128
          %128 = vsyncadd [#allocation3], %s127
          %s129 = smul.addr %s125, 64
          %s130 = scalar_lea.hbm %s0, %s129
          %s131 = sshll.u32 [#allocation2], 4
          %s132 = int_to_ptr.vmem [resolvable:$true] %s131
          %137 = dma.hbm_to_vmem [thread:$0]  %s130, 128, %s132, [#allocation3], 64, 64, 4
        $region16: #{tpu_custom_call.1} parent=11 // pred_fallthru
          _
      $region12: #{tpu_custom_call.1} parent=5 // pred_fallthru
        _
      %p138 = scmp.lt.s32.totalorder %s15, 2
      // Predicated region
      $region17: #{tpu_custom_call.1} parent=5 // pred_check
        %p139 = pneg %p138
      $region18: #{tpu_custom_call.1} parent=5 // pred_check_branch
        %141 = sbr.rel (%p139) target = $region20
      $region19: #{tpu_custom_call.1} parent=5 // pred_region
        // Predicated region
        $region21: #{tpu_custom_call.1} parent=19 // pred_check
          %p142 = pneg %p73
        $region22: #{tpu_custom_call.1} parent=19 // pred_check_branch
          %144 = sbr.rel (%p142) target = $region24
        $region23: #{tpu_custom_call.1} parent=19 // pred_region
          %s145 = sand.u32 %s63, 1
          %s146 = scalar_lea.sflag [#allocation6], %s145
          %s147 = sand.u32 %s63, 1
          %s148 = smul.addr %s147, 16
          %s149 = scalar_lea.vmem [#allocation5], %s148
          %s151 = ssub.s32 256, 256
          %152 = vsyncadd %s146, %s151
          %s153 = smul.addr %s22, 64
          %s154 = scalar_lea.hbm %s1, %s153
          %s155 = sshll.u32 %s149, 4
          %s156 = int_to_ptr.vmem [resolvable:$true] %s155
          %161 = dma.hbm_to_vmem [thread:$0]  %s154, 256, %s156, %s146, 128, 64, 4
        $region24: #{tpu_custom_call.1} parent=19 // pred_fallthru
          _
      $region20: #{tpu_custom_call.1} parent=5 // pred_fallthru
        _
      %p162 = scmp.le.s32.totalorder 1, %s15
      %p163 = scmp.lt.s32.totalorder %s15, 3
      %p164 = pnand %p162, %p163
      %p165 = pneg %p164
      // Predicated region
      $region25: #{tpu_custom_call.1} parent=5 // pred_check
        _
      $region26: #{tpu_custom_call.1} parent=5 // pred_check_branch
        %167 = sbr.rel (%p164) target = $region28
      $region27: #{tpu_custom_call.1} parent=5 // pred_region
        %s168 = ssub.s32 %s15, 1
        // Predicated region
        $region29: #{tpu_custom_call.1} parent=27 // pred_check
          %p169 = pneg %p53
        $region30: #{tpu_custom_call.1} parent=27 // pred_check_branch
          %171 = sbr.rel (%p169) target = $region32
        $region31: #{tpu_custom_call.1} parent=27 // pred_region
          %172 = dma.done [#allocation3], 128
        $region32: #{tpu_custom_call.1} parent=27 // pred_fallthru
          _
        %s173 = sand.u32 %s66, 1
        %s174 = scalar_lea.sflag [#allocation6], %s173
        %s175 = sand.u32 %s66, 1
        %s176 = smul.addr %s175, 16
        %s177 = scalar_lea.vmem [#allocation5], %s176
        // Predicated region
        $region33: #{tpu_custom_call.1} parent=27 // pred_check
          %p178 = pneg %p79
        $region34: #{tpu_custom_call.1} parent=27 // pred_check_branch
          %180 = sbr.rel (%p178) target = $region36
        $region35: #{tpu_custom_call.1} parent=27 // pred_region
          %181 = dma.done %s174, 256
        $region36: #{tpu_custom_call.1} parent=27 // pred_fallthru
          _
        %p182 = pneg %p53
        %p183 = pneg %p50
        %s184 = sand.u32 %s66, 1
        %s185 = scalar_lea.sflag [#allocation6], %s184
        %s186 = sand.u32 %s66, 1
        %s187 = smul.addr %s186, 16
        %s188 = scalar_lea.vmem [#allocation5], %s187
        %p189 = pneg %p79
        %p190 = pneg %p76
        %p191 = pneg %p107
        %p192 = pneg %p104
        %s193 = sand.u32 %s94, 1
        %s194 = scalar_lea.sflag [#allocation4], %s193
        %s195 = sand.u32 %s94, 1
        %s196 = smul.addr %s195, 8
        %s197 = scalar_lea.vmem [#allocation7], %s196
        %s198 = smul.u32 2, %s25
        %s199 = smul.u32 2, %s25
        %v201 = vld [vmem:[#allocation2] sm:$0xf]
        %v202 = vld [vmem:[#allocation2 + $0x4] sm:$0xf]
        %v203 = vld [vmem:[%s177] sm:$0xf]
        %v204 = vld [vmem:[%s177 + $0x4] sm:$0xf]
        %v205 = vld [vmem:[%s177 + $0x8] sm:$0xf]
        %v206 = vld [vmem:[%s177 + $0xc] sm:$0xf]
        %v209 = vunpack.c.l.b16 %v201
        %v210 = vunpack.c.l.b16 %v202
        %v211 = vpack.c.b16 %v210, %v209
        %v216 = vunpack.c.l.b16 %v203
        %v217 = vunpack.c.l.b16 %v204
        %v218 = vunpack.c.l.b16 %v205
        %v219 = vunpack.c.l.b16 %v206
        %v220 = vpack.c.b16 %v217, %v216
        %v221 = vpack.c.b16 %v219, %v218
        %vm224 = vcmask 261120
        %v226 = vsel %vm224, %v211, 0
        %228 = vmatprep.subr.bf16.mxu0 0
        %229 = vmatpush1.bf16.msra.mxu0 0
        %230 = vmatprep.subr.bf16.mxu0 0
        %231 = vmatpush1.bf16.msra.mxu0 0
        %232 = vmatprep.subr.bf16.mxu0 0
        %233 = vmatpush1.bf16.msra.mxu0 0
        %234 = vmatprep.subr.bf16.mxu0 0
        %235 = vmatpush1.bf16.msra.mxu0 0
        %236 = vmatprep.subr.bf16.mxu0 0
        %237 = vmatpush1.bf16.msra.mxu0 0
        %238 = vmatprep.subr.bf16.mxu0 0
        %239 = vmatpush1.bf16.msra.mxu0 0
        %240 = vmatprep.subr.bf16.mxu0 0
        %241 = vmatpush1.bf16.msra.mxu0 %v221
        %242 = vmatprep.subr.bf16.mxu0 0
        %243 = vmatpush1.bf16.msra.mxu0 %v220
        %244 = vmatprep.subr.bf16.mxu0 0
        %245 = vmatpush2.bf16.msra.mxu0 0
        %246 = vmatprep.subr.bf16.mxu0 0
        %247 = vmatpush2.bf16.msra.mxu0 0
        %248 = vmatprep.subr.bf16.mxu0 0
        %249 = vmatpush2.bf16.msra.mxu0 0
        %250 = vmatprep.subr.bf16.mxu0 0
        %251 = vmatpush2.bf16.msra.mxu0 0
        %252 = vmatprep.subr.bf16.mxu0 0
        %253 = vmatpush2.bf16.msra.mxu0 0
        %254 = vmatprep.subr.bf16.mxu0 0
        %255 = vmatpush2.bf16.msra.mxu0 0
        %256 = vmatprep.subr.bf16.mxu0 0
        %257 = vmatpush2.bf16.msra.mxu0 0
        %258 = vmatprep.subr.bf16.mxu0 0
        %259 = vmatpush2.bf16.msra.mxu0 0
        %260 = vmatprep.mubr.bf16.mxu0 0
        %261 = vmatmul.mubr.bf16.gmra.mxu0 %v226
        %v262 = vpop.f32.mrf.mxu0
        %v263 = vadd.f32 0.0, %v262
        %v264 = vpop.f32.mrf.mxu0
        %v265 = vpop.f32.mrf.mxu0
        %v266 = vadd.f32 0.0, %v265
        %v267 = vpop.f32.mrf.mxu0
        %268 = vdwg.mxu0
        %v269 = vpack.c.bf16 %v266, %v263
        %v271 = vunpack.c.l.b16 %v269
        %v272 = vunpack.c.h.b16 %v269
        %v273 = vpack.c.b16 %v271, %v271
        %v274 = vpack.c.b16 %v272, %v272
        %277 = vst [vmem:[%s197] sm:$0xf] %v273
        %278 = vst [vmem:[%s197 + $0x4] sm:$0xf] %v274
        %s279 = sand.u32 %s94, 1
        %s280 = scalar_lea.sflag [#allocation4], %s279
        %s281 = sand.u32 %s94, 1
        %s282 = smul.addr %s281, 8
        %s283 = scalar_lea.vmem [#allocation7], %s282
        // Predicated region
        $region37: #{tpu_custom_call.1} parent=27 // pred_check
          %p284 = pneg %p104
        $region38: #{tpu_custom_call.1} parent=27 // pred_check_branch
          %286 = sbr.rel (%p284) target = $region40
        $region39: #{tpu_custom_call.1} parent=27 // pred_region
          %s287 = smul.u32 2, %s25
          %s289 = ssub.s32 128, 128
          %290 = vsyncadd %s280, %s289
          %s291 = smul.addr %s287, 2
          %s292 = sadd.s32 %s24, %s291
          %s293 = smul.addr %s292, 64
          %s294 = scalar_lea.hbm %s2, %s293
          %s295 = sshll.u32 %s283, 4
          %s296 = int_to_ptr.vmem [resolvable:$true] %s295
          %301 = dma.vmem_to_hbm [thread:$0]  %s296, 128, %s294, %s280, 64, 128, 4
        $region40: #{tpu_custom_call.1} parent=27 // pred_fallthru
          _
      $region28: #{tpu_custom_call.1} parent=5 // pred_fallthru
        _
      %p302 = scmp.le.s32.totalorder 2, %s15
      // Predicated region
      $region41: #{tpu_custom_call.1} parent=5 // pred_check
        %p303 = pneg %p302
      $region42: #{tpu_custom_call.1} parent=5 // pred_check_branch
        %305 = sbr.rel (%p303) target = $region44
      $region43: #{tpu_custom_call.1} parent=5 // pred_region
        %s306 = ssub.s32 %s15, 2
        // Predicated region
        $region45: #{tpu_custom_call.1} parent=43 // pred_check
          %p307 = pneg %p110
        $region46: #{tpu_custom_call.1} parent=43 // pred_check_branch
          %309 = sbr.rel (%p307) target = $region48
        $region47: #{tpu_custom_call.1} parent=43 // pred_region
          %s310 = sand.u32 %s95, 1
          %s311 = scalar_lea.sflag [#allocation4], %s310
          %s312 = sand.u32 %s95, 1
          %s313 = smul.addr %s312, 8
          %s314 = scalar_lea.vmem [#allocation7], %s313
          %315 = dma.done %s311, 128
        $region48: #{tpu_custom_call.1} parent=43 // pred_fallthru
          _
      $region44: #{tpu_custom_call.1} parent=5 // pred_fallthru
        _
    $region6: #{tpu_custom_call.1} parent=1 // loop_footer
      %s19 = sadd.s32 1, %s15
    $region7: #{tpu_custom_call.1} parent=1 // loop_footer_branch
      %14 = sbr.rel target = $region3
    $region8: #{tpu_custom_call.1} parent=1 // loop_exit
      _
    %316 = vsyncpa [#allocation3], 1
    %s317 = scalar_lea.sflag [#allocation3], 1
    %318 = vsyncpa %s317, 1
    %319 = vsyncpa [#allocation6], 1
    %s320 = scalar_lea.sflag [#allocation6], 1
    %321 = vsyncpa %s320, 1
    %322 = vsyncpa [#allocation4], 1
    %s323 = scalar_lea.sflag [#allocation4], 1
    %324 = vsyncpa %s323, 1

</llo_original>
